<compile_context>
chip_gen: v6e
topology: v6e:2x2x1
jax: 0.10.0
libtpu: 0.0.40
codegen_flags: <defaults>
</compile_context>

<pallas_src>
import functools

import jax
import jax.numpy as jnp
from jax import lax
from jax.experimental import pallas as pl
from jax.experimental.pallas import tpu as pltpu


def _round_up(x, m):
    return ((x + m - 1) // m) * m


def _relative_loss_kernel(orow_ref, trow_ref, ocol_ref, tcol_ref,
                          res_ref, acc_ref, *, k, tile_i):
    step = pl.program_id(0)

    @pl.when(step == 0)
    def _init():
        acc_ref[...] = jnp.zeros_like(acc_ref)

    # Row view (1, Np) and column view (TILE, 1) of the same error vector,
    # each computed from its own input layout (no in-kernel relayout).
    t_row = trow_ref[...]
    e_row = ((t_row - orow_ref[...]) / t_row) ** 2            # (1, Np)
    t_col = tcol_ref[...]
    e_col = ((t_col - ocol_ref[...]) / t_col) ** 2            # (TILE, 1)

    # Order NaNs last (matches torch.sort / jnp.sort) so they are trimmed.
    key_row = jnp.where(jnp.isnan(e_row), jnp.inf, e_row)
    key_col = jnp.where(jnp.isnan(e_col), jnp.inf, e_col)

    n_pad = e_row.shape[1]
    j_idx = lax.broadcasted_iota(jnp.int32, (tile_i, n_pad), 1)                    # global col idx
    i_idx = lax.broadcasted_iota(jnp.int32, (tile_i, n_pad), 0) + step * tile_i    # global row idx

    # rank_i = #{j : e_j < e_i} + #{j < i : e_j == e_i}, fused into a single
    # predicate and a single lane-axis reduction, accumulated in int32.
    cmp = jnp.logical_or(
        key_row < key_col,
        jnp.logical_and(key_row == key_col, j_idx < i_idx))
    rank = jnp.sum(cmp.astype(jnp.int32), axis=1, keepdims=True)                   # (TILE, 1)

    # Keep the k smallest (same value-set as sort(error)[:k]).  Use where()
    # instead of multiply-by-mask so excluded NaN/inf never contaminate.
    sel = rank < k
    partial = jnp.sum(jnp.where(sel, e_col, jnp.float32(0.0)),
                      axis=0, keepdims=True)                                       # (1, 1)
    acc_ref[...] += partial

    @pl.when(step == pl.num_programs(0) - 1)
    def _finish():
        res_ref[...] = acc_ref[...] / jnp.float32(k)


def relative_loss_95(output, target):
    """output, target: 1-D float arrays of identical length N."""
    n = output.shape[0]
    k = int(n * 0.97)
    if k == 0:
        # torch.mean over an empty slice is NaN.
        return jnp.float32(jnp.nan)

    out_f = output.astype(jnp.float32)
    tgt_f = target.astype(jnp.float32)

    # Row-tile size: multiple of 8 (sublane constraint), capped at 128.
    tile_i = min(128, _round_up(n, 8))
    n_pad = _round_up(n, tile_i)
    pad = n_pad - n
    if pad:
        # Padded entries get error = +inf -> ranked last -> never selected,
        # and never alter the rank of a real element.
        out_f = jnp.concatenate([out_f, jnp.full((pad,), jnp.inf, jnp.float32)])
        tgt_f = jnp.concatenate([tgt_f, jnp.ones((pad,), jnp.float32)])

    out_row = out_f.reshape(1, n_pad)
    tgt_row = tgt_f.reshape(1, n_pad)
    out_col = out_f.reshape(n_pad, 1)
    tgt_col = tgt_f.reshape(n_pad, 1)

    grid_spec = pltpu.PrefetchScalarGridSpec(
        num_scalar_prefetch=0,
        grid=(n_pad // tile_i,),
        in_specs=[
            pl.BlockSpec((1, n_pad), lambda i: (0, 0)),     # output, row view
            pl.BlockSpec((1, n_pad), lambda i: (0, 0)),     # target, row view
            pl.BlockSpec((tile_i, 1), lambda i: (i, 0)),    # output, col tile
            pl.BlockSpec((tile_i, 1), lambda i: (i, 0)),    # target, col tile
        ],
        out_specs=pl.BlockSpec((1, 1), lambda i: (0, 0)),
        scratch_shapes=[pltpu.VMEM((1, 1), jnp.float32)],
    )

    res = pl.pallas_call(
        functools.partial(_relative_loss_kernel, k=k, tile_i=tile_i),
        out_shape=jax.ShapeDtypeStruct((1, 1), jnp.float32),
        grid_spec=grid_spec,
        compiler_params=pltpu.CompilerParams(
            dimension_semantics=("arbitrary",)),
    )(out_row, tgt_row, out_col, tgt_col)
    return res[0, 0]


def _reference(output, target):
    e = ((target - output) / target) ** 2
    e = jnp.sort(e)
    k = int(e.shape[0] * 0.97)
    return jnp.mean(e[:k])


if __name__ == "__main__":
    key = jax.random.PRNGKey(0)
    k1, k2 = jax.random.split(key)
    N = 256
    # keep target away from zero so the relative error is well-behaved
    target = jax.random.uniform(k1, (N,), jnp.float32, minval=0.5, maxval=2.0)
    output = target + 0.1 * jax.random.normal(k2, (N,), jnp.float32)

    result = relative_loss_95(output, target)
    jax.block_until_ready(result)

    ref = _reference(output, target)
    assert jnp.allclose(result, ref, rtol=1e-5, atol=1e-6), (result, ref)

    # Non-tile-aligned length exercises the padding path.
    N2 = 100
    target2 = jax.random.uniform(k2, (N2,), jnp.float32, minval=0.5, maxval=2.0)
    output2 = target2 + 0.05 * jax.random.normal(k1, (N2,), jnp.float32)
    result2 = relative_loss_95(output2, target2)
    jax.block_until_ready(result2)
    ref2 = _reference(output2, target2)
    assert jnp.allclose(result2, ref2, rtol=1e-5, atol=1e-6), (result2, ref2)

    print("KERNEL_OK")
</pallas_src>

<mosaic_0001>
module attributes {stable_mosaic.version = 11 : i64} {
  func.func @_relative_loss_kernel(%arg0: i32, %arg1: memref<1x256xf32, #tpu.memory_space<vmem>>, %arg2: memref<1x256xf32, #tpu.memory_space<vmem>>, %arg3: memref<128x1xf32, #tpu.memory_space<vmem>>, %arg4: memref<128x1xf32, #tpu.memory_space<vmem>>, %arg5: memref<1x1xf32, #tpu.memory_space<vmem>>, %arg6: memref<1x1xf32, #tpu.memory_space<vmem>>) attributes {dimension_semantics = [#tpu.dimension_semantics<arbitrary>], iteration_bounds = array<i64: 2>, scalar_prefetch = 0 : i64, scratch_operands = 1 : i64, tpu.core_type = #tpu.core_type<tc>, window_params = [{pipeline_mode = #tpu.pipeline_mode<synchronous>, transform_indices = @transform_0, window_bounds = array<i64: 1, 256>}, {pipeline_mode = #tpu.pipeline_mode<synchronous>, transform_indices = @transform_1, window_bounds = array<i64: 1, 256>}, {transform_indices = @transform_2, window_bounds = array<i64: 128, 1>}, {transform_indices = @transform_3, window_bounds = array<i64: 128, 1>}, {pipeline_mode = #tpu.pipeline_mode<synchronous>, transform_indices = @transform_4, window_bounds = array<i64: 1, 1>}]} {
    %c0_i32 = arith.constant 0 : i32
    %0 = arith.cmpi eq, %arg0, %c0_i32 : i32
    %1 = arith.extui %0 : i1 to i32
    %c0_i32_0 = arith.constant 0 : i32
    %2 = arith.cmpi ne, %1, %c0_i32_0 : i32
    scf.if %2 {
      %cst_17 = arith.constant 0.000000e+00 : f32
      %48 = vector.broadcast %cst_17 : f32 to vector<1x1xf32>
      %c0_18 = arith.constant 0 : index
      %c0_19 = arith.constant 0 : index
      %49 = vector.load %arg6[%c0_18, %c0_19] : memref<1x1xf32, #tpu.memory_space<vmem>>, vector<1x1xf32>
      tpu.vector_store %arg6[%c0_18, %c0_19], %48 {strides = array<i32>} : memref<1x1xf32, #tpu.memory_space<vmem>>, vector<1x1xf32>,
    } else {
    }
    %c0 = arith.constant 0 : index
    %c0_1 = arith.constant 0 : index
    %3 = vector.load %arg2[%c0, %c0_1] : memref<1x256xf32, #tpu.memory_space<vmem>>, vector<1x256xf32>
    %c0_2 = arith.constant 0 : index
    %c0_3 = arith.constant 0 : index
    %4 = vector.load %arg1[%c0_2, %c0_3] : memref<1x256xf32, #tpu.memory_space<vmem>>, vector<1x256xf32>
    %5 = arith.subf %3, %4 : vector<1x256xf32>
    %6 = arith.divf %5, %3 : vector<1x256xf32>
    %7 = arith.mulf %6, %6 : vector<1x256xf32>
    %c0_4 = arith.constant 0 : index
    %c0_5 = arith.constant 0 : index
    %8 = vector.load %arg4[%c0_4, %c0_5] : memref<128x1xf32, #tpu.memory_space<vmem>>, vector<128x1xf32>
    %c0_6 = arith.constant 0 : index
    %c0_7 = arith.constant 0 : index
    %9 = vector.load %arg3[%c0_6, %c0_7] : memref<128x1xf32, #tpu.memory_space<vmem>>, vector<128x1xf32>
    %10 = arith.subf %8, %9 : vector<128x1xf32>
    %11 = arith.divf %10, %8 : vector<128x1xf32>
    %12 = arith.mulf %11, %11 : vector<128x1xf32>
    %13 = arith.cmpf one, %7, %7 : vector<1x256xf32>
    %cst = arith.constant 0x7F800000 : f32
    %14 = vector.broadcast %cst : f32 to vector<1x256xf32>
    %15 = arith.select %13, %14, %7 : vector<1x256xi1>, vector<1x256xf32>
    %16 = arith.cmpf one, %12, %12 : vector<128x1xf32>
    %cst_8 = arith.constant 0x7F800000 : f32
    %17 = vector.broadcast %cst_8 : f32 to vector<128x1xf32>
    %18 = arith.select %16, %17, %12 : vector<128x1xi1>, vector<128x1xf32>
    %19 = tpu.iota {dimensions = array<i32: 1>} : vector<128x256xi32>
    %20 = tpu.iota {dimensions = array<i32: 0>} : vector<128x256xi32>
    %c128_i32 = arith.constant 128 : i32
    %21 = arith.muli %arg0, %c128_i32 : i32
    %22 = vector.broadcast %21 : i32 to vector<128x256xi32>
    %23 = arith.addi %20, %22 : vector<128x256xi32>
    %24 = vector.broadcast %15 : vector<1x256xf32> to vector<128x256xf32>
    %25 = vector.broadcast %18 : vector<128x1xf32> to vector<128x256xf32>
    %26 = arith.cmpf olt, %24, %25 : vector<128x256xf32>
    %27 = vector.broadcast %15 : vector<1x256xf32> to vector<128x256xf32>
    %28 = vector.broadcast %18 : vector<128x1xf32> to vector<128x256xf32>
    %29 = arith.cmpf oeq, %27, %28 : vector<128x256xf32>
    %30 = arith.cmpi slt, %19, %23 : vector<128x256xi32>
    %31 = arith.andi %29, %30 : vector<128x256xi1>
    %32 = arith.ori %26, %31 : vector<128x256xi1>
    %33 = arith.extui %32 : vector<128x256xi1> to vector<128x256xi32>
    %cst_9 = arith.constant dense<0> : vector<128xi32>
    %34 = vector.multi_reduction <add>, %33, %cst_9 [1] : vector<128x256xi32> to vector<128xi32>
    %35 = vector.shape_cast %34 : vector<128xi32> to vector<128x1xi32>
    %c248_i32 = arith.constant 248 : i32
    %36 = vector.broadcast %c248_i32 : i32 to vector<128x1xi32>
    %37 = arith.cmpi slt, %35, %36 : vector<128x1xi32>
    %cst_10 = arith.constant 0.000000e+00 : f32
    %38 = vector.broadcast %cst_10 : f32 to vector<128x1xf32>
    %39 = arith.select %37, %12, %38 : vector<128x1xi1>, vector<128x1xf32>
    %cst_11 = arith.constant dense<0.000000e+00> : vector<1xf32>
    %40 = vector.multi_reduction <add>, %39, %cst_11 [0] : vector<128x1xf32> to vector<1xf32>
    %41 = vector.shape_cast %40 : vector<1xf32> to vector<1x1xf32>
    %c0_12 = arith.constant 0 : index
    %c0_13 = arith.constant 0 : index
    %42 = vector.load %arg6[%c0_12, %c0_13] : memref<1x1xf32, #tpu.memory_space<vmem>>, vector<1x1xf32>
    %43 = arith.addf %42, %41 : vector<1x1xf32>
    %c0_14 = arith.constant 0 : index
    %c0_15 = arith.constant 0 : index
    %44 = vector.load %arg6[%c0_14, %c0_15] : memref<1x1xf32, #tpu.memory_space<vmem>>, vector<1x1xf32>
    tpu.vector_store %arg6[%c0_14, %c0_15], %43 {strides = array<i32>} : memref<1x1xf32, #tpu.memory_space<vmem>>, vector<1x1xf32>,
    %c1_i32 = arith.constant 1 : i32
    %45 = arith.cmpi eq, %arg0, %c1_i32 : i32
    %46 = arith.extui %45 : i1 to i32
    %c0_i32_16 = arith.constant 0 : i32
    %47 = arith.cmpi ne, %46, %c0_i32_16 : i32
    scf.if %47 {
      %c0_17 = arith.constant 0 : index
      %c0_18 = arith.constant 0 : index
      %48 = vector.load %arg6[%c0_17, %c0_18] : memref<1x1xf32, #tpu.memory_space<vmem>>, vector<1x1xf32>
      %cst_19 = arith.constant 2.480000e+02 : f32
      %49 = vector.broadcast %cst_19 : f32 to vector<1x1xf32>
      %50 = arith.divf %48, %49 : vector<1x1xf32>
      %c0_20 = arith.constant 0 : index
      %c0_21 = arith.constant 0 : index
      %51 = vector.load %arg5[%c0_20, %c0_21] : memref<1x1xf32, #tpu.memory_space<vmem>>, vector<1x1xf32>
      tpu.vector_store %arg5[%c0_20, %c0_21], %50 {strides = array<i32>} : memref<1x1xf32, #tpu.memory_space<vmem>>, vector<1x1xf32>,
    } else {
    }
    return
  }
  func.func @transform_0(%arg0: i32) -> (i32, i32) {
    %c0_i32 = arith.constant 0 : i32
    %c0_i32_0 = arith.constant 0 : i32
    %c0_i32_1 = arith.constant 0 : i32
    return %c0_i32, %c0_i32_0 : i32, i32
  }
  func.func @transform_1(%arg0: i32) -> (i32, i32) {
    %c0_i32 = arith.constant 0 : i32
    %c0_i32_0 = arith.constant 0 : i32
    %c0_i32_1 = arith.constant 0 : i32
    return %c0_i32, %c0_i32_0 : i32, i32
  }
  func.func @transform_2(%arg0: i32) -> (i32, i32) {
    %c0_i32 = arith.constant 0 : i32
    %c0_i32_0 = arith.constant 0 : i32
    return %arg0, %c0_i32 : i32, i32
  }
  func.func @transform_3(%arg0: i32) -> (i32, i32) {
    %c0_i32 = arith.constant 0 : i32
    %c0_i32_0 = arith.constant 0 : i32
    return %arg0, %c0_i32 : i32, i32
  }
  func.func @transform_4(%arg0: i32) -> (i32, i32) {
    %c0_i32 = arith.constant 0 : i32
    %c0_i32_0 = arith.constant 0 : i32
    %c0_i32_1 = arith.constant 0 : i32
    return %c0_i32, %c0_i32_0 : i32, i32
  }
}

</mosaic_0001>

<llo_original>
// kernel: tpu_custom_call.1
$region0: #{tpu_custom_call.1}
  #allocation0 [shape = 'u32[]', space=smem, size = 0x4, offset = 0x4, fixed_abs, tag = 'smem constant byte address 0x4 - core index']
  #allocation1 [shape = 'u32[144,128]{1,0:T(1,128)}', space=vmem, size = 0x12000, scoped, tag = 'internal scratch']
  #allocation2 [shape = 'f32[1,1]{1,0:T(1,128)}', space=vmem, size = 0x200, scoped, tag = 'scratch operand']
  %s0 = inlined_call_operand.vmem [shape: f32[1,256], index: 0, kind: input, shape index: {}]
  %s1 = inlined_call_operand.vmem [shape: f32[1,256], index: 1, kind: input, shape index: {}]
  %s2 = inlined_call_operand.vmem [shape: f32[256,1], index: 2, kind: input, shape index: {}]
  %s3 = inlined_call_operand.vmem [shape: f32[256,1], index: 3, kind: input, shape index: {}]
  %s4 = inlined_call_operand.hbm [shape: f32[1,1], index: 4, kind: output, shape index: {}]
  %s5 = sld [smem:[#allocation0]]
  $region57: #{tpu_custom_call.1} parent=0
    _
  %s7 = ssub.s32 1, %s5
  %s8 = scalar_select 0, %s7, %s5
  $region1: #{tpu_custom_call.1} parent=0
    #allocation3 [shape = 'u8[512]{0}', space=vmem, size = 0x400, scoped, tag = 'output window, operand 0, single buffered']
    #allocation4 [shape = 's32[2]{0}', space=sflag, size = 0x8, scoped, tag = 'scoped memory for tpu_custom_call.1']
    %9 = vsyncpa [#allocation4], 0
    loop: start=0, step=1, limit=4
    $region2: #{tpu_custom_call.1} parent=1 // loop_pre_header
      _
    $region3: #{tpu_custom_call.1} parent=1 // loop_header
      %s11 = sphi 0, %s15
      %p12 = scmp.ge.s32.totalorder %s11, 4
      %s19 = sphi 0, %s19
      %s21 = sphi 0, %s19
      %s22 = sphi 0, %s21
      %s36 = sphi 0, %s22
      %s40 = sphi 0, %s40
      %s42 = sphi 0, %s40
      %s43 = sphi 0, %s42
      %s57 = sphi 0, %s43
      %s63 = sphi 0, %s65
      %s66 = sphi 0, %s63
      %s67 = sphi 0, %s66
      %s83 = sphi 0, %s67
      %s89 = sphi 0, %s91
      %s92 = sphi 0, %s89
      %s93 = sphi 0, %s92
      %s109 = sphi 0, %s93
      %s113 = sphi 0, %s113
      %s115 = sphi 0, %s113
      %s116 = sphi 0, %s115
      %s130 = sphi 0, %s116
    $region4: #{tpu_custom_call.1} parent=1 // loop_header_branch
      %14 = sbr.rel (%p12) target = $region8
    $region5: #{tpu_custom_call.1} parent=1 // loop_body
      %s16 = ssub.s32 %s11, 1
      %s17 = ssub.s32 %s11, 2
      %s18 = sadd.s32 %s11, 1
      %s20 = sadd.s32 %s19, 1
      %p23 = scmp.eq.s32.totalorder %s11, 1
      %p24 = scmp.ne.s32.totalorder %s19, %s21
      %p25 = scmp.eq.s32.totalorder %s11, 0
      %p26 = por %p24, %p25
      %p27 = scmp.ne.s32.totalorder %s19, %s21
      %p28 = scmp.eq.s32.totalorder %s16, 1
      %p29 = por %p27, %p28
      %p30 = scmp.ne.s32.totalorder %s21, %s22
      %p31 = scmp.eq.s32.totalorder %s16, 0
      %p32 = por %p30, %p31
      %p33 = scmp.ne.s32.totalorder %s21, %s22
      %p34 = scmp.eq.s32.totalorder %s17, 1
      %p35 = por %p33, %p34
      %p37 = scmp.ne.s32.totalorder %s22, %s36
      %p38 = scmp.eq.s32.totalorder %s17, 0
      %p39 = por %p37, %p38
      %s41 = sadd.s32 %s40, 1
      %p44 = scmp.eq.s32.totalorder %s11, 1
      %p45 = scmp.ne.s32.totalorder %s40, %s42
      %p46 = scmp.eq.s32.totalorder %s11, 0
      %p47 = por %p45, %p46
      %p48 = scmp.ne.s32.totalorder %s40, %s42
      %p49 = scmp.eq.s32.totalorder %s16, 1
      %p50 = por %p48, %p49
      %p51 = scmp.ne.s32.totalorder %s42, %s43
      %p52 = scmp.eq.s32.totalorder %s16, 0
      %p53 = por %p51, %p52
      %p54 = scmp.ne.s32.totalorder %s42, %s43
      %p55 = scmp.eq.s32.totalorder %s17, 1
      %p56 = por %p54, %p55
      %p58 = scmp.ne.s32.totalorder %s43, %s57
      %p59 = scmp.eq.s32.totalorder %s17, 0
      %p60 = por %p58, %p59
      %s61 = ssub.s32 %s11, %s18
      %p62 = scmp.eq.s32.totalorder %s61, 0
      %s64 = sadd.s32 %s63, 1
      %s65 = scalar_select %p62, %s63, %s64
      %p68 = pneg %p62
      %p69 = scmp.eq.s32.totalorder %s11, 1
      %p70 = por %p68, %p69
      %p71 = scmp.ne.s32.totalorder %s63, %s66
      %p72 = scmp.eq.s32.totalorder %s11, 0
      %p73 = por %p71, %p72
      %p74 = scmp.ne.s32.totalorder %s63, %s66
      %p75 = scmp.eq.s32.totalorder %s16, 1
      %p76 = por %p74, %p75
      %p77 = scmp.ne.s32.totalorder %s66, %s67
      %p78 = scmp.eq.s32.totalorder %s16, 0
      %p79 = por %p77, %p78
      %p80 = scmp.ne.s32.totalorder %s66, %s67
      %p81 = scmp.eq.s32.totalorder %s17, 1
      %p82 = por %p80, %p81
      %p84 = scmp.ne.s32.totalorder %s67, %s83
      %p85 = scmp.eq.s32.totalorder %s17, 0
      %p86 = por %p84, %p85
      %s87 = ssub.s32 %s11, %s18
      %p88 = scmp.eq.s32.totalorder %s87, 0
      %s90 = sadd.s32 %s89, 1
      %s91 = scalar_select %p88, %s89, %s90
      %p94 = pneg %p88
      %p95 = scmp.eq.s32.totalorder %s11, 1
      %p96 = por %p94, %p95
      %p97 = scmp.ne.s32.totalorder %s89, %s92
      %p98 = scmp.eq.s32.totalorder %s11, 0
      %p99 = por %p97, %p98
      %p100 = scmp.ne.s32.totalorder %s89, %s92
      %p101 = scmp.eq.s32.totalorder %s16, 1
      %p102 = por %p100, %p101
      %p103 = scmp.ne.s32.totalorder %s92, %s93
      %p104 = scmp.eq.s32.totalorder %s16, 0
      %p105 = por %p103, %p104
      %p106 = scmp.ne.s32.totalorder %s92, %s93
      %p107 = scmp.eq.s32.totalorder %s17, 1
      %p108 = por %p106, %p107
      %p110 = scmp.ne.s32.totalorder %s93, %s109
      %p111 = scmp.eq.s32.totalorder %s17, 0
      %p112 = por %p110, %p111
      %s114 = sadd.s32 %s113, 1
      %p117 = scmp.eq.s32.totalorder %s11, 1
      %p118 = scmp.ne.s32.totalorder %s113, %s115
      %p119 = scmp.eq.s32.totalorder %s11, 0
      %p120 = por %p118, %p119
      %p121 = scmp.ne.s32.totalorder %s113, %s115
      %p122 = scmp.eq.s32.totalorder %s16, 1
      %p123 = por %p121, %p122
      %p124 = scmp.ne.s32.totalorder %s115, %s116
      %p125 = scmp.eq.s32.totalorder %s16, 0
      %p126 = por %p124, %p125
      %p127 = scmp.ne.s32.totalorder %s115, %s116
      %p128 = scmp.eq.s32.totalorder %s17, 1
      %p129 = por %p127, %p128
      %p131 = scmp.ne.s32.totalorder %s116, %s130
      %p132 = scmp.eq.s32.totalorder %s17, 0
      %p133 = por %p131, %p132
      %p134 = scmp.le.s32.totalorder 1, %s11
      %p135 = scmp.lt.s32.totalorder %s11, 3
      %p136 = pnand %p134, %p135
      %p137 = pneg %p136
      // Predicated region
      $region9: #{tpu_custom_call.1} parent=5 // pred_check
        _
      $region10: #{tpu_custom_call.1} parent=5 // pred_check_branch
        %139 = sbr.rel (%p136) target = $region12
      $region11: #{tpu_custom_call.1} parent=5 // pred_region
        %s140 = ssub.s32 %s11, 1
        // Predicated region
        $region13: #{tpu_custom_call.1} parent=11 // pred_check
          %p141 = pneg %p32
        $region14: #{tpu_custom_call.1} parent=11 // pred_check_branch
          %143 = sbr.rel (%p141) target = $region16
        $region15: #{tpu_custom_call.1} parent=11 // pred_region
          _
        $region16: #{tpu_custom_call.1} parent=11 // pred_fallthru
          _
        // Predicated region
        $region17: #{tpu_custom_call.1} parent=11 // pred_check
          %p144 = pneg %p53
        $region18: #{tpu_custom_call.1} parent=11 // pred_check_branch
          %146 = sbr.rel (%p144) target = $region20
        $region19: #{tpu_custom_call.1} parent=11 // pred_region
          _
        $region20: #{tpu_custom_call.1} parent=11 // pred_fallthru
          _
      $region12: #{tpu_custom_call.1} parent=5 // pred_fallthru
        _
      %p147 = scmp.lt.s32.totalorder %s11, 2
      // Predicated region
      $region21: #{tpu_custom_call.1} parent=5 // pred_check
        %p148 = pneg %p147
      $region22: #{tpu_custom_call.1} parent=5 // pred_check_branch
        %150 = sbr.rel (%p148) target = $region24
      $region23: #{tpu_custom_call.1} parent=5 // pred_region
        // Predicated region
        $region25: #{tpu_custom_call.1} parent=23 // pred_check
          %p151 = pneg %p73
        $region26: #{tpu_custom_call.1} parent=23 // pred_check_branch
          %153 = sbr.rel (%p151) target = $region28
        $region27: #{tpu_custom_call.1} parent=23 // pred_region
          %s154 = smul.u32 16, %s11
          %p155 = scmp.lt.s32.totalorder %s154, 31
          %s156 = scalar_select %p155, %s154, 31
          %s157 = smul.addr %s156, 8
          %s158 = scalar_lea.vmem %s2, %s157
          %s159 = smul.u32 16, %s11
        $region28: #{tpu_custom_call.1} parent=23 // pred_fallthru
          _
        // Predicated region
        $region29: #{tpu_custom_call.1} parent=23 // pred_check
          %p160 = pneg %p99
        $region30: #{tpu_custom_call.1} parent=23 // pred_check_branch
          %162 = sbr.rel (%p160) target = $region32
        $region31: #{tpu_custom_call.1} parent=23 // pred_region
          %s163 = smul.u32 16, %s11
          %p164 = scmp.lt.s32.totalorder %s163, 31
          %s165 = scalar_select %p164, %s163, 31
          %s166 = smul.addr %s165, 8
          %s167 = scalar_lea.vmem %s3, %s166
          %s168 = smul.u32 16, %s11
        $region32: #{tpu_custom_call.1} parent=23 // pred_fallthru
          _
      $region24: #{tpu_custom_call.1} parent=5 // pred_fallthru
        _
      %p169 = scmp.le.s32.totalorder 1, %s11
      %p170 = scmp.lt.s32.totalorder %s11, 3
      %p171 = pnand %p169, %p170
      %p172 = pneg %p171
      // Predicated region
      $region33: #{tpu_custom_call.1} parent=5 // pred_check
        _
      $region34: #{tpu_custom_call.1} parent=5 // pred_check_branch
        %174 = sbr.rel (%p171) target = $region36
      $region35: #{tpu_custom_call.1} parent=5 // pred_region
        %s175 = ssub.s32 %s11, 1
        %p176 = pneg %p32
        %p177 = pneg %p29
        %p178 = pneg %p53
        %p179 = pneg %p50
        %s180 = smul.u32 16, %s16
        %p181 = scmp.lt.s32.totalorder %s180, 31
        %s182 = scalar_select %p181, %s180, 31
        %s183 = smul.addr %s182, 8
        %s184 = scalar_lea.vmem %s2, %s183
        %p185 = pneg %p79
        %p186 = pneg %p76
        %s187 = smul.u32 16, %s16
        %p188 = scmp.lt.s32.totalorder %s187, 31
        %s189 = scalar_select %p188, %s187, 31
        %s190 = smul.addr %s189, 8
        %s191 = scalar_lea.vmem %s3, %s190
        %p192 = pneg %p105
        %p193 = pneg %p102
        %p194 = pneg %p126
        %p195 = pneg %p123
        %s196 = smul.u32 16, %s16
        %p197 = scmp.lt.s32.totalorder %s196, 31
        %s198 = scalar_select %p197, %s196, 31
        %s199 = smul.addr %s198, 8
        %s200 = scalar_lea.vmem %s2, %s199
        %s201 = smul.u32 16, %s16
        %s202 = smul.u32 16, %s16
        %p203 = scmp.lt.s32.totalorder %s202, 31
        %s204 = scalar_select %p203, %s202, 31
        %s205 = smul.addr %s204, 8
        %s206 = scalar_lea.vmem %s3, %s205
        %s207 = smul.u32 16, %s16
        %p208 = scmp.eq.s32.totalorder %s16, 0
        // Predicated region
        $region37: #{tpu_custom_call.1} parent=35 // pred_check
          %p209 = pneg %p208
        $region38: #{tpu_custom_call.1} parent=35 // pred_check_branch
          %211 = sbr.rel (%p209) target = $region40
        $region39: #{tpu_custom_call.1} parent=35 // pred_region
          %vm212 = vcmask 0
          %213 = vst.msk [vmem:[#allocation2] sm:$0x1] %vm212, 0.0
        $region40: #{tpu_custom_call.1} parent=35 // pred_fallthru
          _
        %v214 = vld [vmem:[%s1] sm:$0x3]
        %v215 = vld [vmem:[%s0] sm:$0x3]
        %v216 = vsub.f32 %v214, %v215
        %v217 = vrcp.pop %v214
        %v218 = vmul.f32 %v216, %v217
        %v219 = vmul.f32 %v218, %v218
        %v220 = vld [vmem:[%s206] sm:$0xff]
        %v221 = vld [vmem:[%s206 + $0x8] sm:$0xff]
        %v222 = vld [vmem:[%s206 + $0x10] sm:$0xff]
        %v223 = vld [vmem:[%s206 + $0x18] sm:$0xff]
        %v224 = vld [vmem:[%s206 + $0x20] sm:$0xff]
        %v225 = vld [vmem:[%s206 + $0x28] sm:$0xff]
        %v226 = vld [vmem:[%s206 + $0x30] sm:$0xff]
        %v227 = vld [vmem:[%s206 + $0x38] sm:$0xff]
        %v228 = vld [vmem:[%s206 + $0x40] sm:$0xff]
        %v229 = vld [vmem:[%s206 + $0x48] sm:$0xff]
        %v230 = vld [vmem:[%s206 + $0x50] sm:$0xff]
        %v231 = vld [vmem:[%s206 + $0x58] sm:$0xff]
        %v232 = vld [vmem:[%s206 + $0x60] sm:$0xff]
        %v233 = vld [vmem:[%s206 + $0x68] sm:$0xff]
        %v234 = vld [vmem:[%s206 + $0x70] sm:$0xff]
        %v235 = vld [vmem:[%s206 + $0x78] sm:$0xff]
        %v236 = vld [vmem:[%s200] sm:$0xff]
        %v237 = vld [vmem:[%s200 + $0x8] sm:$0xff]
        %v238 = vld [vmem:[%s200 + $0x10] sm:$0xff]
        %v239 = vld [vmem:[%s200 + $0x18] sm:$0xff]
        %v240 = vld [vmem:[%s200 + $0x20] sm:$0xff]
        %v241 = vld [vmem:[%s200 + $0x28] sm:$0xff]
        %v242 = vld [vmem:[%s200 + $0x30] sm:$0xff]
        %v243 = vld [vmem:[%s200 + $0x38] sm:$0xff]
        %v244 = vld [vmem:[%s200 + $0x40] sm:$0xff]
        %v245 = vld [vmem:[%s200 + $0x48] sm:$0xff]
        %v246 = vld [vmem:[%s200 + $0x50] sm:$0xff]
        %v247 = vld [vmem:[%s200 + $0x58] sm:$0xff]
        %v248 = vld [vmem:[%s200 + $0x60] sm:$0xff]
        %v249 = vld [vmem:[%s200 + $0x68] sm:$0xff]
        %v250 = vld [vmem:[%s200 + $0x70] sm:$0xff]
        %v251 = vld [vmem:[%s200 + $0x78] sm:$0xff]
        %v252 = vsub.f32 %v220, %v236
        %v253 = vsub.f32 %v221, %v237
        %v254 = vsub.f32 %v222, %v238
        %v255 = vsub.f32 %v223, %v239
        %v256 = vsub.f32 %v224, %v240
        %v257 = vsub.f32 %v225, %v241
        %v258 = vsub.f32 %v226, %v242
        %v259 = vsub.f32 %v227, %v243
        %v260 = vsub.f32 %v228, %v244
        %v261 = vsub.f32 %v229, %v245
        %v262 = vsub.f32 %v230, %v246
        %v263 = vsub.f32 %v231, %v247
        %v264 = vsub.f32 %v232, %v248
        %v265 = vsub.f32 %v233, %v249
        %v266 = vsub.f32 %v234, %v250
        %v267 = vsub.f32 %v235, %v251
        %v268 = vrcp.pop %v220
        %v269 = vmul.f32 %v252, %v268
        %v270 = vrcp.pop %v221
        %v271 = vmul.f32 %v253, %v270
        %v272 = vrcp.pop %v222
        %v273 = vmul.f32 %v254, %v272
        %v274 = vrcp.pop %v223
        %v275 = vmul.f32 %v255, %v274
        %v276 = vrcp.pop %v224
        %v277 = vmul.f32 %v256, %v276
        %v278 = vrcp.pop %v225
        %v279 = vmul.f32 %v257, %v278
        %v280 = vrcp.pop %v226
        %v281 = vmul.f32 %v258, %v280
        %v282 = vrcp.pop %v227
        %v283 = vmul.f32 %v259, %v282
        %v284 = vrcp.pop %v228
        %v285 = vmul.f32 %v260, %v284
        %v286 = vrcp.pop %v229
        %v287 = vmul.f32 %v261, %v286
        %v288 = vrcp.pop %v230
        %v289 = vmul.f32 %v262, %v288
        %v290 = vrcp.pop %v231
        %v291 = vmul.f32 %v263, %v290
        %v292 = vrcp.pop %v232
        %v293 = vmul.f32 %v264, %v292
        %v294 = vrcp.pop %v233
        %v295 = vmul.f32 %v265, %v294
        %v296 = vrcp.pop %v234
        %v297 = vmul.f32 %v266, %v296
        %v298 = vrcp.pop %v235
        %v299 = vmul.f32 %v267, %v298
        %v300 = vmul.f32 %v269, %v269
        %v301 = vmul.f32 %v271, %v271
        %v302 = vmul.f32 %v273, %v273
        %v303 = vmul.f32 %v275, %v275
        %v304 = vmul.f32 %v277, %v277
        %v305 = vmul.f32 %v279, %v279
        %v306 = vmul.f32 %v281, %v281
        %v307 = vmul.f32 %v283, %v283
        %v308 = vmul.f32 %v285, %v285
        %v309 = vmul.f32 %v287, %v287
        %v310 = vmul.f32 %v289, %v289
        %v311 = vmul.f32 %v291, %v291
        %v312 = vmul.f32 %v293, %v293
        %v313 = vmul.f32 %v295, %v295
        %v314 = vmul.f32 %v297, %v297
        %v315 = vmul.f32 %v299, %v299
        %vm316 = vcmp.ne.f32.partialorder %v219, %v219
        %v317 = vsel %vm316, inf, %v219
        %vm318 = vcmp.ne.f32.partialorder %v300, %v300
        %vm319 = vcmp.ne.f32.partialorder %v301, %v301
        %vm320 = vcmp.ne.f32.partialorder %v302, %v302
        %vm321 = vcmp.ne.f32.partialorder %v303, %v303
        %vm322 = vcmp.ne.f32.partialorder %v304, %v304
        %vm323 = vcmp.ne.f32.partialorder %v305, %v305
        %vm324 = vcmp.ne.f32.partialorder %v306, %v306
        %vm325 = vcmp.ne.f32.partialorder %v307, %v307
        %vm326 = vcmp.ne.f32.partialorder %v308, %v308
        %vm327 = vcmp.ne.f32.partialorder %v309, %v309
        %vm328 = vcmp.ne.f32.partialorder %v310, %v310
        %vm329 = vcmp.ne.f32.partialorder %v311, %v311
        %vm330 = vcmp.ne.f32.partialorder %v312, %v312
        %vm331 = vcmp.ne.f32.partialorder %v313, %v313
        %vm332 = vcmp.ne.f32.partialorder %v314, %v314
        %vm333 = vcmp.ne.f32.partialorder %v315, %v315
        %v334 = vsel %vm318, inf, %v300
        %v335 = vsel %vm319, inf, %v301
        %v336 = vsel %vm320, inf, %v302
        %v337 = vsel %vm321, inf, %v303
        %v338 = vsel %vm322, inf, %v304
        %v339 = vsel %vm323, inf, %v305
        %v340 = vsel %vm324, inf, %v306
        %v341 = vsel %vm325, inf, %v307
        %v342 = vsel %vm326, inf, %v308
        %v343 = vsel %vm327, inf, %v309
        %v344 = vsel %vm328, inf, %v310
        %v345 = vsel %vm329, inf, %v311
        %v346 = vsel %vm330, inf, %v312
        %v347 = vsel %vm331, inf, %v313
        %v348 = vsel %vm332, inf, %v314
        %v349 = vsel %vm333, inf, %v315
        %v350 = vlaneseq
        %v351 = vand.u32 %v350, 127
        %v352 = vadd.s32 %v351, 128
        %v353 = vlaneseq
        %v354 = vshrl.u32 %v353, 7
        %v355 = vadd.s32 %v354, 8
        %v356 = vadd.s32 %v354, 16
        %v357 = vadd.s32 %v354, 24
        %v358 = vadd.s32 %v354, 32
        %v359 = vadd.s32 %v354, 40
        %v360 = vadd.s32 %v354, 48
        %v361 = vadd.s32 %v354, 56
        %v362 = vadd.s32 %v354, 64
        %v363 = vadd.s32 %v354, 72
        %v364 = vadd.s32 %v354, 80
        %v365 = vadd.s32 %v354, 88
        %v366 = vadd.s32 %v354, 96
        %v367 = vadd.s32 %v354, 104
        %v368 = vadd.s32 %v354, 112
        %v369 = vadd.s32 %v354, 120
        %s370 = smul.u32 %s16, 128
        %v371 = vstv %s370
        %v372 = vadd.s32 %v354, %v371
        %v373 = vadd.s32 %v355, %v371
        %v374 = vadd.s32 %v356, %v371
        %v375 = vadd.s32 %v357, %v371
        %v376 = vadd.s32 %v358, %v371
        %v377 = vadd.s32 %v359, %v371
        %v378 = vadd.s32 %v360, %v371
        %v379 = vadd.s32 %v361, %v371
        %v380 = vadd.s32 %v362, %v371
        %v381 = vadd.s32 %v363, %v371
        %v382 = vadd.s32 %v364, %v371
        %v383 = vadd.s32 %v365, %v371
        %v384 = vadd.s32 %v366, %v371
        %v385 = vadd.s32 %v367, %v371
        %v386 = vadd.s32 %v368, %v371
        %v387 = vadd.s32 %v369, %v371
        %v389 = vlaneseq
        %v390 = vshrl.u32 %v389, 7
        %v391 = vsub.s32 0, %v390
        %v392 = vrot.slane %v317, %v391
        %v393 = vlaneseq
        %v394 = vshrl.u32 %v393, 7
        %v395 = vsub.s32 1, %v394
        %v396 = vrot.slane %v317, %v395
        %400 = vset.pattern.permute.xlu0 0
        %401 = vperm.xlu0 %400, %v334
        %v402 = vpop.permute.xlu0 %401
        %405 = vset.pattern.permute.xlu0 0
        %406 = vperm.xlu0 %405, %v335
        %v407 = vpop.permute.xlu0 %406
        %410 = vset.pattern.permute.xlu0 0
        %411 = vperm.xlu0 %410, %v336
        %v412 = vpop.permute.xlu0 %411
        %415 = vset.pattern.permute.xlu0 0
        %416 = vperm.xlu0 %415, %v337
        %v417 = vpop.permute.xlu0 %416
        %420 = vset.pattern.permute.xlu0 0
        %421 = vperm.xlu0 %420, %v338
        %v422 = vpop.permute.xlu0 %421
        %425 = vset.pattern.permute.xlu0 0
        %426 = vperm.xlu0 %425, %v339
        %v427 = vpop.permute.xlu0 %426
        %430 = vset.pattern.permute.xlu0 0
        %431 = vperm.xlu0 %430, %v340
        %v432 = vpop.permute.xlu0 %431
        %435 = vset.pattern.permute.xlu0 0
        %436 = vperm.xlu0 %435, %v341
        %v437 = vpop.permute.xlu0 %436
        %440 = vset.pattern.permute.xlu0 0
        %441 = vperm.xlu0 %440, %v342
        %v442 = vpop.permute.xlu0 %441
        %445 = vset.pattern.permute.xlu0 0
        %446 = vperm.xlu0 %445, %v343
        %v447 = vpop.permute.xlu0 %446
        %450 = vset.pattern.permute.xlu0 0
        %451 = vperm.xlu0 %450, %v344
        %v452 = vpop.permute.xlu0 %451
        %455 = vset.pattern.permute.xlu0 0
        %456 = vperm.xlu0 %455, %v345
        %v457 = vpop.permute.xlu0 %456
        %460 = vset.pattern.permute.xlu0 0
        %461 = vperm.xlu0 %460, %v346
        %v462 = vpop.permute.xlu0 %461
        %465 = vset.pattern.permute.xlu0 0
        %466 = vperm.xlu0 %465, %v347
        %v467 = vpop.permute.xlu0 %466
        %470 = vset.pattern.permute.xlu0 0
        %471 = vperm.xlu0 %470, %v348
        %v472 = vpop.permute.xlu0 %471
        %475 = vset.pattern.permute.xlu0 0
        %476 = vperm.xlu0 %475, %v349
        %v477 = vpop.permute.xlu0 %476
        %vm479 = vcmp.lt.f32.partialorder %v392, %v402
        %vm480 = vcmp.lt.f32.partialorder %v396, %v402
        %vm481 = vcmp.lt.f32.partialorder %v392, %v407
        %vm482 = vcmp.lt.f32.partialorder %v396, %v407
        %vm483 = vcmp.lt.f32.partialorder %v392, %v412
        %vm484 = vcmp.lt.f32.partialorder %v396, %v412
        %vm485 = vcmp.lt.f32.partialorder %v392, %v417
        %vm486 = vcmp.lt.f32.partialorder %v396, %v417
        %vm487 = vcmp.lt.f32.partialorder %v392, %v422
        %vm488 = vcmp.lt.f32.partialorder %v396, %v422
        %vm489 = vcmp.lt.f32.partialorder %v392, %v427
        %vm490 = vcmp.lt.f32.partialorder %v396, %v427
        %vm491 = vcmp.lt.f32.partialorder %v392, %v432
        %vm492 = vcmp.lt.f32.partialorder %v396, %v432
        %vm493 = vcmp.lt.f32.partialorder %v392, %v437
        %vm494 = vcmp.lt.f32.partialorder %v396, %v437
        %vm495 = vcmp.lt.f32.partialorder %v392, %v442
        %vm496 = vcmp.lt.f32.partialorder %v396, %v442
        %vm497 = vcmp.lt.f32.partialorder %v392, %v447
        %vm498 = vcmp.lt.f32.partialorder %v396, %v447
        %vm499 = vcmp.lt.f32.partialorder %v392, %v452
        %vm500 = vcmp.lt.f32.partialorder %v396, %v452
        %vm501 = vcmp.lt.f32.partialorder %v392, %v457
        %vm502 = vcmp.lt.f32.partialorder %v396, %v457
        %vm503 = vcmp.lt.f32.partialorder %v392, %v462
        %vm504 = vcmp.lt.f32.partialorder %v396, %v462
        %vm505 = vcmp.lt.f32.partialorder %v392, %v467
        %vm506 = vcmp.lt.f32.partialorder %v396, %v467
        %vm507 = vcmp.lt.f32.partialorder %v392, %v472
        %vm508 = vcmp.lt.f32.partialorder %v396, %v472
        %vm509 = vcmp.lt.f32.partialorder %v392, %v477
        %vm510 = vcmp.lt.f32.partialorder %v396, %v477
        %vm511 = vcmp.eq.f32.partialorder %v392, %v402
        %vm512 = vcmp.eq.f32.partialorder %v396, %v402
        %vm513 = vcmp.eq.f32.partialorder %v392, %v407
        %vm514 = vcmp.eq.f32.partialorder %v396, %v407
        %vm515 = vcmp.eq.f32.partialorder %v392, %v412
        %vm516 = vcmp.eq.f32.partialorder %v396, %v412
        %vm517 = vcmp.eq.f32.partialorder %v392, %v417
        %vm518 = vcmp.eq.f32.partialorder %v396, %v417
        %vm519 = vcmp.eq.f32.partialorder %v392, %v422
        %vm520 = vcmp.eq.f32.partialorder %v396, %v422
        %vm521 = vcmp.eq.f32.partialorder %v392, %v427
        %vm522 = vcmp.eq.f32.partialorder %v396, %v427
        %vm523 = vcmp.eq.f32.partialorder %v392, %v432
        %vm524 = vcmp.eq.f32.partialorder %v396, %v432
        %vm525 = vcmp.eq.f32.partialorder %v392, %v437
        %vm526 = vcmp.eq.f32.partialorder %v396, %v437
        %vm527 = vcmp.eq.f32.partialorder %v392, %v442
        %vm528 = vcmp.eq.f32.partialorder %v396, %v442
        %vm529 = vcmp.eq.f32.partialorder %v392, %v447
        %vm530 = vcmp.eq.f32.partialorder %v396, %v447
        %vm531 = vcmp.eq.f32.partialorder %v392, %v452
        %vm532 = vcmp.eq.f32.partialorder %v396, %v452
        %vm533 = vcmp.eq.f32.partialorder %v392, %v457
        %vm534 = vcmp.eq.f32.partialorder %v396, %v457
        %vm535 = vcmp.eq.f32.partialorder %v392, %v462
        %vm536 = vcmp.eq.f32.partialorder %v396, %v462
        %vm537 = vcmp.eq.f32.partialorder %v392, %v467
        %vm538 = vcmp.eq.f32.partialorder %v396, %v467
        %vm539 = vcmp.eq.f32.partialorder %v392, %v472
        %vm540 = vcmp.eq.f32.partialorder %v396, %v472
        %vm541 = vcmp.eq.f32.partialorder %v392, %v477
        %vm542 = vcmp.eq.f32.partialorder %v396, %v477
        %vm543 = vcmp.lt.s32.totalorder %v351, %v372
        %vm544 = vcmp.lt.s32.totalorder %v352, %v372
        %vm545 = vcmp.lt.s32.totalorder %v351, %v373
        %vm546 = vcmp.lt.s32.totalorder %v352, %v373
        %vm547 = vcmp.lt.s32.totalorder %v351, %v374
        %vm548 = vcmp.lt.s32.totalorder %v352, %v374
        %vm549 = vcmp.lt.s32.totalorder %v351, %v375
        %vm550 = vcmp.lt.s32.totalorder %v352, %v375
        %vm551 = vcmp.lt.s32.totalorder %v351, %v376
        %vm552 = vcmp.lt.s32.totalorder %v352, %v376
        %vm553 = vcmp.lt.s32.totalorder %v351, %v377
        %vm554 = vcmp.lt.s32.totalorder %v352, %v377
        %vm555 = vcmp.lt.s32.totalorder %v351, %v378
        %vm556 = vcmp.lt.s32.totalorder %v352, %v378
        %vm557 = vcmp.lt.s32.totalorder %v351, %v379
        %vm558 = vcmp.lt.s32.totalorder %v352, %v379
        %vm559 = vcmp.lt.s32.totalorder %v351, %v380
        %vm560 = vcmp.lt.s32.totalorder %v352, %v380
        %vm561 = vcmp.lt.s32.totalorder %v351, %v381
        %vm562 = vcmp.lt.s32.totalorder %v352, %v381
        %vm563 = vcmp.lt.s32.totalorder %v351, %v382
        %vm564 = vcmp.lt.s32.totalorder %v352, %v382
        %vm565 = vcmp.lt.s32.totalorder %v351, %v383
        %vm566 = vcmp.lt.s32.totalorder %v352, %v383
        %vm567 = vcmp.lt.s32.totalorder %v351, %v384
        %vm568 = vcmp.lt.s32.totalorder %v352, %v384
        %vm569 = vcmp.lt.s32.totalorder %v351, %v385
        %vm570 = vcmp.lt.s32.totalorder %v352, %v385
        %vm571 = vcmp.lt.s32.totalorder %v351, %v386
        %vm572 = vcmp.lt.s32.totalorder %v352, %v386
        %vm573 = vcmp.lt.s32.totalorder %v351, %v387
        %vm574 = vcmp.lt.s32.totalorder %v352, %v387
        %vm575 = vmand %vm511, %vm543
        %vm576 = vmand %vm512, %vm544
        %vm577 = vmand %vm513, %vm545
        %vm578 = vmand %vm514, %vm546
        %vm579 = vmand %vm515, %vm547
        %vm580 = vmand %vm516, %vm548
        %vm581 = vmand %vm517, %vm549
        %vm582 = vmand %vm518, %vm550
        %vm583 = vmand %vm519, %vm551
        %vm584 = vmand %vm520, %vm552
        %vm585 = vmand %vm521, %vm553
        %vm586 = vmand %vm522, %vm554
        %vm587 = vmand %vm523, %vm555
        %vm588 = vmand %vm524, %vm556
        %vm589 = vmand %vm525, %vm557
        %vm590 = vmand %vm526, %vm558
        %vm591 = vmand %vm527, %vm559
        %vm592 = vmand %vm528, %vm560
        %vm593 = vmand %vm529, %vm561
        %vm594 = vmand %vm530, %vm562
        %vm595 = vmand %vm531, %vm563
        %vm596 = vmand %vm532, %vm564
        %vm597 = vmand %vm533, %vm565
        %vm598 = vmand %vm534, %vm566
        %vm599 = vmand %vm535, %vm567
        %vm600 = vmand %vm536, %vm568
        %vm601 = vmand %vm537, %vm569
        %vm602 = vmand %vm538, %vm570
        %vm603 = vmand %vm539, %vm571
        %vm604 = vmand %vm540, %vm572
        %vm605 = vmand %vm541, %vm573
        %vm606 = vmand %vm542, %vm574
        %vm607 = vmor %vm479, %vm575
        %vm608 = vmor %vm480, %vm576
        %vm609 = vmor %vm481, %vm577
        %vm610 = vmor %vm482, %vm578
        %vm611 = vmor %vm483, %vm579
        %vm612 = vmor %vm484, %vm580
        %vm613 = vmor %vm485, %vm581
        %vm614 = vmor %vm486, %vm582
        %vm615 = vmor %vm487, %vm583
        %vm616 = vmor %vm488, %vm584
        %vm617 = vmor %vm489, %vm585
        %vm618 = vmor %vm490, %vm586
        %vm619 = vmor %vm491, %vm587
        %vm620 = vmor %vm492, %vm588
        %vm621 = vmor %vm493, %vm589
        %vm622 = vmor %vm494, %vm590
        %vm623 = vmor %vm495, %vm591
        %vm624 = vmor %vm496, %vm592
        %vm625 = vmor %vm497, %vm593
        %vm626 = vmor %vm498, %vm594
        %vm627 = vmor %vm499, %vm595
        %vm628 = vmor %vm500, %vm596
        %vm629 = vmor %vm501, %vm597
        %vm630 = vmor %vm502, %vm598
        %vm631 = vmor %vm503, %vm599
        %vm632 = vmor %vm504, %vm600
        %vm633 = vmor %vm505, %vm601
        %vm634 = vmor %vm506, %vm602
        %vm635 = vmor %vm507, %vm603
        %vm636 = vmor %vm508, %vm604
        %vm637 = vmor %vm509, %vm605
        %vm638 = vmor %vm510, %vm606
        %v639 = vsel %vm607, 1, 0
        %v640 = vsel %vm608, 1, 0
        %v641 = vsel %vm609, 1, 0
        %v642 = vsel %vm610, 1, 0
        %v643 = vsel %vm611, 1, 0
        %v644 = vsel %vm612, 1, 0
        %v645 = vsel %vm613, 1, 0
        %v646 = vsel %vm614, 1, 0
        %v647 = vsel %vm615, 1, 0
        %v648 = vsel %vm616, 1, 0
        %v649 = vsel %vm617, 1, 0
        %v650 = vsel %vm618, 1, 0
        %v651 = vsel %vm619, 1, 0
        %v652 = vsel %vm620, 1, 0
        %v653 = vsel %vm621, 1, 0
        %v654 = vsel %vm622, 1, 0
        %v655 = vsel %vm623, 1, 0
        %v656 = vsel %vm624, 1, 0
        %v657 = vsel %vm625, 1, 0
        %v658 = vsel %vm626, 1, 0
        %v659 = vsel %vm627, 1, 0
        %v660 = vsel %vm628, 1, 0
        %v661 = vsel %vm629, 1, 0
        %v662 = vsel %vm630, 1, 0
        %v663 = vsel %vm631, 1, 0
        %v664 = vsel %vm632, 1, 0
        %v665 = vsel %vm633, 1, 0
        %v666 = vsel %vm634, 1, 0
        %v667 = vsel %vm635, 1, 0
        %v668 = vsel %vm636, 1, 0
        %v669 = vsel %vm637, 1, 0
        %v670 = vsel %vm638, 1, 0
        %v671 = vadd.s32 %v639, %v640
        %v672 = vand.u32 %v671, 65535
        %v673 = vshrl.u32 %v671, 16
        %v674 = vcvt.s32.f32 %v672
        %v675 = vcvt.s32.f32 %v673
        %676 = vadd.xlane.f32.xlu0 %v674
        %v677 = vpop.xlane.xlu0 %676
        %678 = vadd.xlane.f32.xlu0 %v675
        %v679 = vpop.xlane.xlu0 %678
        %v680 = vcvt.f32.s32 %v677
        %v681 = vcvt.f32.s32 %v679
        %v682 = vshll.u32 %v681, 16
        %v683 = vadd.s32 %v682, %v680
        %v684 = vadd.s32 %v641, %v642
        %v685 = vand.u32 %v684, 65535
        %v686 = vshrl.u32 %v684, 16
        %v687 = vcvt.s32.f32 %v685
        %v688 = vcvt.s32.f32 %v686
        %689 = vadd.xlane.f32.xlu0 %v687
        %v690 = vpop.xlane.xlu0 %689
        %691 = vadd.xlane.f32.xlu0 %v688
        %v692 = vpop.xlane.xlu0 %691
        %v693 = vcvt.f32.s32 %v690
        %v694 = vcvt.f32.s32 %v692
        %v695 = vshll.u32 %v694, 16
        %v696 = vadd.s32 %v695, %v693
        %v697 = vadd.s32 %v643, %v644
        %v698 = vand.u32 %v697, 65535
        %v699 = vshrl.u32 %v697, 16
        %v700 = vcvt.s32.f32 %v698
        %v701 = vcvt.s32.f32 %v699
        %702 = vadd.xlane.f32.xlu0 %v700
        %v703 = vpop.xlane.xlu0 %702
        %704 = vadd.xlane.f32.xlu0 %v701
        %v705 = vpop.xlane.xlu0 %704
        %v706 = vcvt.f32.s32 %v703
        %v707 = vcvt.f32.s32 %v705
        %v708 = vshll.u32 %v707, 16
        %v709 = vadd.s32 %v708, %v706
        %v710 = vadd.s32 %v645, %v646
        %v711 = vand.u32 %v710, 65535
        %v712 = vshrl.u32 %v710, 16
        %v713 = vcvt.s32.f32 %v711
        %v714 = vcvt.s32.f32 %v712
        %715 = vadd.xlane.f32.xlu0 %v713
        %v716 = vpop.xlane.xlu0 %715
        %717 = vadd.xlane.f32.xlu0 %v714
        %v718 = vpop.xlane.xlu0 %717
        %v719 = vcvt.f32.s32 %v716
        %v720 = vcvt.f32.s32 %v718
        %v721 = vshll.u32 %v720, 16
        %v722 = vadd.s32 %v721, %v719
        %v723 = vadd.s32 %v647, %v648
        %v724 = vand.u32 %v723, 65535
        %v725 = vshrl.u32 %v723, 16
        %v726 = vcvt.s32.f32 %v724
        %v727 = vcvt.s32.f32 %v725
        %728 = vadd.xlane.f32.xlu0 %v726
        %v729 = vpop.xlane.xlu0 %728
        %730 = vadd.xlane.f32.xlu0 %v727
        %v731 = vpop.xlane.xlu0 %730
        %v732 = vcvt.f32.s32 %v729
        %v733 = vcvt.f32.s32 %v731
        %v734 = vshll.u32 %v733, 16
        %v735 = vadd.s32 %v734, %v732
        %v736 = vadd.s32 %v649, %v650
        %v737 = vand.u32 %v736, 65535
        %v738 = vshrl.u32 %v736, 16
        %v739 = vcvt.s32.f32 %v737
        %v740 = vcvt.s32.f32 %v738
        %741 = vadd.xlane.f32.xlu0 %v739
        %v742 = vpop.xlane.xlu0 %741
        %743 = vadd.xlane.f32.xlu0 %v740
        %v744 = vpop.xlane.xlu0 %743
        %v745 = vcvt.f32.s32 %v742
        %v746 = vcvt.f32.s32 %v744
        %v747 = vshll.u32 %v746, 16
        %v748 = vadd.s32 %v747, %v745
        %v749 = vadd.s32 %v651, %v652
        %v750 = vand.u32 %v749, 65535
        %v751 = vshrl.u32 %v749, 16
        %v752 = vcvt.s32.f32 %v750
        %v753 = vcvt.s32.f32 %v751
        %754 = vadd.xlane.f32.xlu0 %v752
        %v755 = vpop.xlane.xlu0 %754
        %756 = vadd.xlane.f32.xlu0 %v753
        %v757 = vpop.xlane.xlu0 %756
        %v758 = vcvt.f32.s32 %v755
        %v759 = vcvt.f32.s32 %v757
        %v760 = vshll.u32 %v759, 16
        %v761 = vadd.s32 %v760, %v758
        %v762 = vadd.s32 %v653, %v654
        %v763 = vand.u32 %v762, 65535
        %v764 = vshrl.u32 %v762, 16
        %v765 = vcvt.s32.f32 %v763
        %v766 = vcvt.s32.f32 %v764
        %767 = vadd.xlane.f32.xlu0 %v765
        %v768 = vpop.xlane.xlu0 %767
        %769 = vadd.xlane.f32.xlu0 %v766
        %v770 = vpop.xlane.xlu0 %769
        %v771 = vcvt.f32.s32 %v768
        %v772 = vcvt.f32.s32 %v770
        %v773 = vshll.u32 %v772, 16
        %v774 = vadd.s32 %v773, %v771
        %v775 = vadd.s32 %v655, %v656
        %v776 = vand.u32 %v775, 65535
        %v777 = vshrl.u32 %v775, 16
        %v778 = vcvt.s32.f32 %v776
        %v779 = vcvt.s32.f32 %v777
        %780 = vadd.xlane.f32.xlu0 %v778
        %v781 = vpop.xlane.xlu0 %780
        %782 = vadd.xlane.f32.xlu0 %v779
        %v783 = vpop.xlane.xlu0 %782
        %v784 = vcvt.f32.s32 %v781
        %v785 = vcvt.f32.s32 %v783
        %v786 = vshll.u32 %v785, 16
        %v787 = vadd.s32 %v786, %v784
        %v788 = vadd.s32 %v657, %v658
        %v789 = vand.u32 %v788, 65535
        %v790 = vshrl.u32 %v788, 16
        %v791 = vcvt.s32.f32 %v789
        %v792 = vcvt.s32.f32 %v790
        %793 = vadd.xlane.f32.xlu0 %v791
        %v794 = vpop.xlane.xlu0 %793
        %795 = vadd.xlane.f32.xlu0 %v792
        %v796 = vpop.xlane.xlu0 %795
        %v797 = vcvt.f32.s32 %v794
        %v798 = vcvt.f32.s32 %v796
        %v799 = vshll.u32 %v798, 16
        %v800 = vadd.s32 %v799, %v797
        %v801 = vadd.s32 %v659, %v660
        %v802 = vand.u32 %v801, 65535
        %v803 = vshrl.u32 %v801, 16
        %v804 = vcvt.s32.f32 %v802
        %v805 = vcvt.s32.f32 %v803
        %806 = vadd.xlane.f32.xlu0 %v804
        %v807 = vpop.xlane.xlu0 %806
        %808 = vadd.xlane.f32.xlu0 %v805
        %v809 = vpop.xlane.xlu0 %808
        %v810 = vcvt.f32.s32 %v807
        %v811 = vcvt.f32.s32 %v809
        %v812 = vshll.u32 %v811, 16
        %v813 = vadd.s32 %v812, %v810
        %v814 = vadd.s32 %v661, %v662
        %v815 = vand.u32 %v814, 65535
        %v816 = vshrl.u32 %v814, 16
        %v817 = vcvt.s32.f32 %v815
        %v818 = vcvt.s32.f32 %v816
        %819 = vadd.xlane.f32.xlu0 %v817
        %v820 = vpop.xlane.xlu0 %819
        %821 = vadd.xlane.f32.xlu0 %v818
        %v822 = vpop.xlane.xlu0 %821
        %v823 = vcvt.f32.s32 %v820
        %v824 = vcvt.f32.s32 %v822
        %v825 = vshll.u32 %v824, 16
        %v826 = vadd.s32 %v825, %v823
        %v827 = vadd.s32 %v663, %v664
        %v828 = vand.u32 %v827, 65535
        %v829 = vshrl.u32 %v827, 16
        %v830 = vcvt.s32.f32 %v828
        %v831 = vcvt.s32.f32 %v829
        %832 = vadd.xlane.f32.xlu0 %v830
        %v833 = vpop.xlane.xlu0 %832
        %834 = vadd.xlane.f32.xlu0 %v831
        %v835 = vpop.xlane.xlu0 %834
        %v836 = vcvt.f32.s32 %v833
        %v837 = vcvt.f32.s32 %v835
        %v838 = vshll.u32 %v837, 16
        %v839 = vadd.s32 %v838, %v836
        %v840 = vadd.s32 %v665, %v666
        %v841 = vand.u32 %v840, 65535
        %v842 = vshrl.u32 %v840, 16
        %v843 = vcvt.s32.f32 %v841
        %v844 = vcvt.s32.f32 %v842
        %845 = vadd.xlane.f32.xlu0 %v843
        %v846 = vpop.xlane.xlu0 %845
        %847 = vadd.xlane.f32.xlu0 %v844
        %v848 = vpop.xlane.xlu0 %847
        %v849 = vcvt.f32.s32 %v846
        %v850 = vcvt.f32.s32 %v848
        %v851 = vshll.u32 %v850, 16
        %v852 = vadd.s32 %v851, %v849
        %v853 = vadd.s32 %v667, %v668
        %v854 = vand.u32 %v853, 65535
        %v855 = vshrl.u32 %v853, 16
        %v856 = vcvt.s32.f32 %v854
        %v857 = vcvt.s32.f32 %v855
        %858 = vadd.xlane.f32.xlu0 %v856
        %v859 = vpop.xlane.xlu0 %858
        %860 = vadd.xlane.f32.xlu0 %v857
        %v861 = vpop.xlane.xlu0 %860
        %v862 = vcvt.f32.s32 %v859
        %v863 = vcvt.f32.s32 %v861
        %v864 = vshll.u32 %v863, 16
        %v865 = vadd.s32 %v864, %v862
        %v866 = vadd.s32 %v669, %v670
        %v867 = vand.u32 %v866, 65535
        %v868 = vshrl.u32 %v866, 16
        %v869 = vcvt.s32.f32 %v867
        %v870 = vcvt.s32.f32 %v868
        %871 = vadd.xlane.f32.xlu0 %v869
        %v872 = vpop.xlane.xlu0 %871
        %873 = vadd.xlane.f32.xlu0 %v870
        %v874 = vpop.xlane.xlu0 %873
        %v875 = vcvt.f32.s32 %v872
        %v876 = vcvt.f32.s32 %v874
        %v877 = vshll.u32 %v876, 16
        %v878 = vadd.s32 %v877, %v875
        %vm879 = vcmp.lt.s32.totalorder %v683, 248
        %vm880 = vcmp.lt.s32.totalorder %v696, 248
        %vm881 = vcmp.lt.s32.totalorder %v709, 248
        %vm882 = vcmp.lt.s32.totalorder %v722, 248
        %vm883 = vcmp.lt.s32.totalorder %v735, 248
        %vm884 = vcmp.lt.s32.totalorder %v748, 248
        %vm885 = vcmp.lt.s32.totalorder %v761, 248
        %vm886 = vcmp.lt.s32.totalorder %v774, 248
        %vm887 = vcmp.lt.s32.totalorder %v787, 248
        %vm888 = vcmp.lt.s32.totalorder %v800, 248
        %vm889 = vcmp.lt.s32.totalorder %v813, 248
        %vm890 = vcmp.lt.s32.totalorder %v826, 248
        %vm891 = vcmp.lt.s32.totalorder %v839, 248
        %vm892 = vcmp.lt.s32.totalorder %v852, 248
        %vm893 = vcmp.lt.s32.totalorder %v865, 248
        %vm894 = vcmp.lt.s32.totalorder %v878, 248
        %v895 = vsel %vm879, %v300, 0.0
        %v896 = vsel %vm880, %v301, 0.0
        %v897 = vsel %vm881, %v302, 0.0
        %v898 = vsel %vm882, %v303, 0.0
        %v899 = vsel %vm883, %v304, 0.0
        %v900 = vsel %vm884, %v305, 0.0
        %v901 = vsel %vm885, %v306, 0.0
        %v902 = vsel %vm886, %v307, 0.0
        %v903 = vsel %vm887, %v308, 0.0
        %v904 = vsel %vm888, %v309, 0.0
        %v905 = vsel %vm889, %v310, 0.0
        %v906 = vsel %vm890, %v311, 0.0
        %v907 = vsel %vm891, %v312, 0.0
        %v908 = vsel %vm892, %v313, 0.0
        %v909 = vsel %vm893, %v314, 0.0
        %v910 = vsel %vm894, %v315, 0.0
        %vm911 = vcmask 7168
        %v912 = vsel %vm911, %v895, 0.0
        %v913 = vsel %vm911, %v896, 0.0
        %v914 = vadd.f32 %v912, %v913
        %v915 = vsel %vm911, %v897, 0.0
        %v916 = vadd.f32 %v914, %v915
        %v917 = vsel %vm911, %v898, 0.0
        %v918 = vadd.f32 %v916, %v917
        %v919 = vsel %vm911, %v899, 0.0
        %v920 = vadd.f32 %v918, %v919
        %v921 = vsel %vm911, %v900, 0.0
        %v922 = vadd.f32 %v920, %v921
        %v923 = vsel %vm911, %v901, 0.0
        %v924 = vadd.f32 %v922, %v923
        %v925 = vsel %vm911, %v902, 0.0
        %v926 = vadd.f32 %v924, %v925
        %v927 = vsel %vm911, %v903, 0.0
        %v928 = vadd.f32 %v926, %v927
        %v929 = vsel %vm911, %v904, 0.0
        %v930 = vadd.f32 %v928, %v929
        %v931 = vsel %vm911, %v905, 0.0
        %v932 = vadd.f32 %v930, %v931
        %v933 = vsel %vm911, %v906, 0.0
        %v934 = vadd.f32 %v932, %v933
        %v935 = vsel %vm911, %v907, 0.0
        %v936 = vadd.f32 %v934, %v935
        %v937 = vsel %vm911, %v908, 0.0
        %v938 = vadd.f32 %v936, %v937
        %v939 = vsel %vm911, %v909, 0.0
        %v940 = vadd.f32 %v938, %v939
        %v941 = vsel %vm911, %v910, 0.0
        %v942 = vadd.f32 %v940, %v941
        %v943 = vrot.slane %v942, 4
        %v944 = vadd.f32 %v942, %v943
        %v945 = vrot.slane %v944, 2
        %v946 = vadd.f32 %v944, %v945
        %v947 = vrot.slane %v946, 1
        %v948 = vadd.f32 %v946, %v947
        %v949 = vld [vmem:[#allocation2] sm:$0x1]
        %v950 = vadd.f32 %v949, %v948
        %vm951 = vcmask 0
        %952 = vst.msk [vmem:[#allocation2] sm:$0x1] %vm951, %v950
        %p953 = scmp.eq.s32.totalorder %s16, 1
        // Predicated region
        $region41: #{tpu_custom_call.1} parent=35 // pred_check
          %p954 = pneg %p953
        $region42: #{tpu_custom_call.1} parent=35 // pred_check_branch
          %956 = sbr.rel (%p954) target = $region44
        $region43: #{tpu_custom_call.1} parent=35 // pred_region
          %v957 = vld [vmem:[#allocation2] sm:$0x1]
          %v958 = vrcp.pop 248.0
          %v959 = vmul.f32 %v957, %v958
          %960 = vst.msk [vmem:[#allocation3] sm:$0x1] %vm951, %v959
        $region44: #{tpu_custom_call.1} parent=35 // pred_fallthru
          _
        // Predicated region
        $region45: #{tpu_custom_call.1} parent=35 // pred_check
          %p961 = pneg %p123
        $region46: #{tpu_custom_call.1} parent=35 // pred_check_branch
          %963 = sbr.rel (%p961) target = $region48
        $region47: #{tpu_custom_call.1} parent=35 // pred_region
          %s965 = ssub.s32 16, 16
          %966 = vsyncadd [#allocation4], %s965
          %s968 = sshll.u32 [#allocation3], 4
          %s969 = int_to_ptr.vmem [resolvable:$true] %s968
          %971 = dma.vmem_to_hbm [thread:$0]  %s969, 16, %s4, [#allocation4]
        $region48: #{tpu_custom_call.1} parent=35 // pred_fallthru
          _
        // Predicated region
        $region49: #{tpu_custom_call.1} parent=35 // pred_check
          %p972 = pneg %p123
        $region50: #{tpu_custom_call.1} parent=35 // pred_check_branch
          %974 = sbr.rel (%p972) target = $region52
        $region51: #{tpu_custom_call.1} parent=35 // pred_region
          %975 = dma.done [#allocation4], 16
        $region52: #{tpu_custom_call.1} parent=35 // pred_fallthru
          _
      $region36: #{tpu_custom_call.1} parent=5 // pred_fallthru
        _
      %p976 = scmp.le.s32.totalorder 2, %s11
      // Predicated region
      $region53: #{tpu_custom_call.1} parent=5 // pred_check
        %p977 = pneg %p976
      $region54: #{tpu_custom_call.1} parent=5 // pred_check_branch
        %979 = sbr.rel (%p977) target = $region56
      $region55: #{tpu_custom_call.1} parent=5 // pred_region
        %s980 = ssub.s32 %s11, 2
      $region56: #{tpu_custom_call.1} parent=5 // pred_fallthru
        _
    $region6: #{tpu_custom_call.1} parent=1 // loop_footer
      %s15 = sadd.s32 1, %s11
    $region7: #{tpu_custom_call.1} parent=1 // loop_footer_branch
      %10 = sbr.rel target = $region3
    $region8: #{tpu_custom_call.1} parent=1 // loop_exit
      _
    %981 = vsyncpa [#allocation4], 1
    %s982 = scalar_lea.sflag [#allocation4], 1
    %983 = vsyncpa %s982, 1

</llo_original>
